<compile_context>
chip_gen: v7x
topology: tpu7x:2x2x1
jax: 0.10.0
libtpu: 0.0.40
codegen_flags: <defaults>
</compile_context>

<pallas_src>
import jax
import jax.numpy as jnp
from jax.experimental import pallas as pl
from jax.experimental.pallas import tpu as pltpu

NUM_BLOCKS = 3


# --------------------------------------------------------------------------- kernel
def mpn_kernel(x_ref, w1_ref, b1_ref, w2_ref, b2_ref, o_ref):
    # x_ref: (TB, D) f32 | w*_ref: (NB, D, D) bf16 | b*_ref: (NB, D) f32
    x = x_ref[...]                                  # residual stream stays f32
    num_blocks = w1_ref.shape[0]                    # small & static -> unrolled loop
    for blk in range(num_blocks):
        h = jnp.dot(x.astype(w1_ref.dtype), w1_ref[blk],
                    preferred_element_type=jnp.float32) + b1_ref[blk]
        h = jnp.maximum(h, 0.0)                     # ReLU in f32 on the VPU
        x = x + jnp.dot(h.astype(w2_ref.dtype), w2_ref[blk],
                        preferred_element_type=jnp.float32) + b2_ref[blk]
    o_ref[...] = x.astype(o_ref.dtype)


# --------------------------------------------------------------------------- helpers
def _num_tensorcores_per_chip():
    """2 TensorCores per chip on v7x, 1 on v5e/v6e (conservative fallback: 1)."""
    try:
        kind = jax.devices()[0].device_kind.lower()
    except Exception:
        return 1
    return 2 if ("v7" in kind or "7x" in kind) else 1


def _resident_spec(block_shape):
    """Grid-invariant (constant index_map) block; single-buffered since it never changes."""
    index_map = lambda i: (0,) * len(block_shape)
    try:
        return pl.BlockSpec(block_shape, index_map, pipeline_mode=pl.Buffered(1))
    except TypeError:   # older jax without pipeline_mode kwarg -> fall back to default
        return pl.BlockSpec(block_shape, index_map)


def _choose_batch_tile(B, D, num_tc):
    """One grid step per TensorCore; only split further if the activation tile gets huge."""
    tb = -(-B // num_tc)                  # ceil(B / steps)
    tb = max(16, -(-tb // 16) * 16)       # round up to multiple of 16 (bf16 sublane tile)
    row_bytes = 2 * 2 * D * 4             # x-in + out tiles, double-buffered, f32
    cap_rows = max(16, ((8 << 20) // row_bytes) // 16 * 16)   # keep activations <= ~8 MiB
    return min(tb, cap_rows)


# --------------------------------------------------------------------------- wrapper
def minimal_perturbation_network(x, w1, b1, w2, b2):
    """x: (B, D) f32.  w1/w2: (NB, D, D) in (in, out) layout (ideally pre-cast bf16 via
    prepare_params).  b1/b2: (NB, D) f32."""
    B, D = x.shape
    nb = w1.shape[0]

    # Weights should already be bf16 (prepare_params); only cast if the caller skipped it.
    if w1.dtype not in (jnp.bfloat16, jnp.float32):
        w1 = w1.astype(jnp.float32)
    if w2.dtype not in (jnp.bfloat16, jnp.float32):
        w2 = w2.astype(jnp.float32)

    num_tc = _num_tensorcores_per_chip()
    tb = _choose_batch_tile(B, D, num_tc)
    num_tiles = -(-B // tb)
    B_pad = num_tiles * tb
    x_in = x if B_pad == B else jnp.pad(x, ((0, B_pad - B), (0, 0)))

    w_itemsize = jnp.dtype(w1.dtype).itemsize

    # explicit VMEM budget: activations double-buffered, params single-buffered, + headroom
    act_bytes = 2 * (2 * tb * D * 4)                      # x tile + out tile, x2 buffers
    param_bytes = 2 * nb * D * D * w_itemsize + 2 * nb * D * 4
    needed = act_bytes + param_bytes
    vmem_limit = int(min(max(32 << 20, 2 * needed), 60 << 20))

    flops = 4 * nb * B_pad * D * D                        # 2 matmuls/block, 2*M*N*K each
    bytes_accessed = ((x_in.size + B_pad * D) * 4         # x in + out (f32)
                      + (w1.size + w2.size) * w_itemsize  # weights (bf16 in hot path)
                      + (b1.size + b2.size) * 4)          # f32 biases
    cost = pl.CostEstimate(flops=flops, transcendentals=0,
                           bytes_accessed=bytes_accessed)

    full_w_spec = _resident_spec((nb, D, D))
    full_b_spec = _resident_spec((nb, D))

    out = pl.pallas_call(
        mpn_kernel,
        out_shape=jax.ShapeDtypeStruct((B_pad, D), x.dtype),
        grid_spec=pltpu.PrefetchScalarGridSpec(
            num_scalar_prefetch=0,
            grid=(num_tiles,),
            in_specs=[
                pl.BlockSpec((tb, D), lambda i: (i, 0)),   # x tile over batch
                full_w_spec, full_b_spec,                  # fc1 params (all blocks)
                full_w_spec, full_b_spec,                  # fc2 params (all blocks)
            ],
            out_specs=pl.BlockSpec((tb, D), lambda i: (i, 0)),
        ),
        compiler_params=pltpu.CompilerParams(
            dimension_semantics=("parallel",),
            vmem_limit_bytes=vmem_limit),
        cost_estimate=cost,
    )(x_in, w1, b1, w2, b2)

    return out[:B] if B_pad != B else out


# --------------------------------------------------------------------------- params
def init_params(key, embedding_dim, num_blocks=NUM_BLOCKS):
    """Matches init_method='default': weights ~ N(0, 0.001), biases = 0.
    Weights are returned f32 in the (in, out) layout used by the matmul; biases (NB, D)."""
    keys = jax.random.split(key, 2 * num_blocks)
    w1 = jnp.stack([
        0.001 * jax.random.normal(keys[2 * i], (embedding_dim, embedding_dim), jnp.float32)
        for i in range(num_blocks)
    ])
    w2 = jnp.stack([
        0.001 * jax.random.normal(keys[2 * i + 1], (embedding_dim, embedding_dim), jnp.float32)
        for i in range(num_blocks)
    ])
    b1 = jnp.zeros((num_blocks, embedding_dim), jnp.float32)
    b2 = jnp.zeros((num_blocks, embedding_dim), jnp.float32)
    return w1, b1, w2, b2


def prepare_params(w1, b1, w2, b2, *, from_torch_layout=False):
    """One-time conversion at parameter-load time (NOT per forward call):
    optional (out,in)->(in,out) transpose, bf16 weight cast, (NB, D) bias layout."""
    if from_torch_layout:
        w1 = jnp.swapaxes(w1, -1, -2)
        w2 = jnp.swapaxes(w2, -1, -2)
    b1 = jnp.asarray(b1, jnp.float32).reshape(b1.shape[0], -1)
    b2 = jnp.asarray(b2, jnp.float32).reshape(b2.shape[0], -1)
    return w1.astype(jnp.bfloat16), b1, w2.astype(jnp.bfloat16), b2


def reference_forward(x, w1, b1, w2, b2):
    # pure-JAX (f32) reference of the PyTorch forward pass
    for blk in range(w1.shape[0]):
        h = jnp.maximum(x @ w1[blk] + b1[blk], 0.0)
        x = x + h @ w2[blk] + b2[blk]
    return x


# --------------------------------------------------------------------------- test
if __name__ == "__main__":
    B, D = 64, 128   # small batch; D=128 keeps the lane axis exactly one vreg wide
    key = jax.random.PRNGKey(0)
    kx, kp = jax.random.split(key)
    x = jax.random.normal(kx, (B, D), jnp.float32)

    w1_f32, b1, w2_f32, b2 = init_params(kp, D)
    # hoisted one-time conversion (bf16 weights for the MXU); hot path never casts
    w1, b1, w2, b2 = prepare_params(w1_f32, b1, w2_f32, b2)

    out = jax.block_until_ready(minimal_perturbation_network(x, w1, b1, w2, b2))

    ref = reference_forward(x, w1_f32, b1, w2_f32, b2)
    assert out.shape == (B, D)
    # tolerance relaxed vs pure-f32 because matmul inputs are bf16 (f32 accumulation);
    # with N(0, 0.001) init weights the observed error is ~1e-6. Real (larger-magnitude)
    # checkpoints may need a looser tolerance or f32 weights.
    assert jnp.allclose(out, ref, atol=2e-4, rtol=2e-4), "mismatch vs JAX reference"

    print("KERNEL_OK")
</pallas_src>

<mosaic_0001>
module attributes {stable_mosaic.version = 11 : i64} {
  func.func @mpn_kernel(%arg0: i32, %arg1: memref<64x128xf32, #tpu.memory_space<vmem>>, %arg2: memref<3x128x128xbf16, #tpu.memory_space<vmem>>, %arg3: memref<3x128xf32, #tpu.memory_space<vmem>>, %arg4: memref<3x128x128xbf16, #tpu.memory_space<vmem>>, %arg5: memref<3x128xf32, #tpu.memory_space<vmem>>, %arg6: memref<64x128xf32, #tpu.memory_space<vmem>>) attributes {dimension_semantics = [#tpu.dimension_semantics<parallel>], iteration_bounds = array<i64: 1>, scalar_prefetch = 0 : i64, scratch_operands = 0 : i64, tpu.core_type = #tpu.core_type<tc>, window_params = [{transform_indices = @transform_0, window_bounds = array<i64: 64, 128>}, {pipeline_mode = #tpu.pipeline_mode<synchronous>, transform_indices = @transform_1, window_bounds = array<i64: 3, 128, 128>}, {pipeline_mode = #tpu.pipeline_mode<synchronous>, transform_indices = @transform_2, window_bounds = array<i64: 3, 128>}, {pipeline_mode = #tpu.pipeline_mode<synchronous>, transform_indices = @transform_3, window_bounds = array<i64: 3, 128, 128>}, {pipeline_mode = #tpu.pipeline_mode<synchronous>, transform_indices = @transform_4, window_bounds = array<i64: 3, 128>}, {transform_indices = @transform_5, window_bounds = array<i64: 64, 128>}]} {
    %c0 = arith.constant 0 : index
    %c0_0 = arith.constant 0 : index
    %0 = vector.load %arg1[%c0, %c0_0] : memref<64x128xf32, #tpu.memory_space<vmem>>, vector<64x128xf32>
    %1 = arith.truncf %0 : vector<64x128xf32> to vector<64x128xbf16>
    %c0_1 = arith.constant 0 : index
    %c0_2 = arith.constant 0 : index
    %c0_3 = arith.constant 0 : index
    %2 = vector.load %arg2[%c0_1, %c0_2, %c0_3] : memref<3x128x128xbf16, #tpu.memory_space<vmem>>, vector<1x128x128xbf16>
    %3 = vector.shape_cast %2 : vector<1x128x128xbf16> to vector<128x128xbf16>
    %cst = arith.constant dense<0.000000e+00> : vector<64x128xf32>
    %4 = tpu.matmul %1, %3, %cst {dimension_numbers = #tpu.dot_dimension_numbers<[1], [0], [0], [1], [0, 0, 1, 1], [], []>} : vector<64x128xbf16>, vector<128x128xbf16>, vector<64x128xf32> -> vector<64x128xf32>
    %c0_4 = arith.constant 0 : index
    %c0_5 = arith.constant 0 : index
    %5 = vector.load %arg3[%c0_4, %c0_5] : memref<3x128xf32, #tpu.memory_space<vmem>>, vector<1x128xf32>
    %6 = vector.shape_cast %5 : vector<1x128xf32> to vector<128xf32>
    %7 = vector.shape_cast %6 : vector<128xf32> to vector<1x128xf32>
    %8 = vector.broadcast %7 : vector<1x128xf32> to vector<64x128xf32>
    %9 = arith.addf %4, %8 : vector<64x128xf32>
    %cst_6 = arith.constant 0.000000e+00 : f32
    %10 = vector.broadcast %cst_6 : f32 to vector<64x128xf32>
    %11 = arith.maximumf %9, %10 : vector<64x128xf32>
    %12 = arith.truncf %11 : vector<64x128xf32> to vector<64x128xbf16>
    %c0_7 = arith.constant 0 : index
    %c0_8 = arith.constant 0 : index
    %c0_9 = arith.constant 0 : index
    %13 = vector.load %arg4[%c0_7, %c0_8, %c0_9] : memref<3x128x128xbf16, #tpu.memory_space<vmem>>, vector<1x128x128xbf16>
    %14 = vector.shape_cast %13 : vector<1x128x128xbf16> to vector<128x128xbf16>
    %cst_10 = arith.constant dense<0.000000e+00> : vector<64x128xf32>
    %15 = tpu.matmul %12, %14, %cst_10 {dimension_numbers = #tpu.dot_dimension_numbers<[1], [0], [0], [1], [0, 0, 1, 1], [], []>} : vector<64x128xbf16>, vector<128x128xbf16>, vector<64x128xf32> -> vector<64x128xf32>
    %16 = arith.addf %0, %15 : vector<64x128xf32>
    %c0_11 = arith.constant 0 : index
    %c0_12 = arith.constant 0 : index
    %17 = vector.load %arg5[%c0_11, %c0_12] : memref<3x128xf32, #tpu.memory_space<vmem>>, vector<1x128xf32>
    %18 = vector.shape_cast %17 : vector<1x128xf32> to vector<128xf32>
    %19 = vector.shape_cast %18 : vector<128xf32> to vector<1x128xf32>
    %20 = vector.broadcast %19 : vector<1x128xf32> to vector<64x128xf32>
    %21 = arith.addf %16, %20 : vector<64x128xf32>
    %22 = arith.truncf %21 : vector<64x128xf32> to vector<64x128xbf16>
    %c1 = arith.constant 1 : index
    %c0_13 = arith.constant 0 : index
    %c0_14 = arith.constant 0 : index
    %23 = vector.load %arg2[%c1, %c0_13, %c0_14] : memref<3x128x128xbf16, #tpu.memory_space<vmem>>, vector<1x128x128xbf16>
    %24 = vector.shape_cast %23 : vector<1x128x128xbf16> to vector<128x128xbf16>
    %cst_15 = arith.constant dense<0.000000e+00> : vector<64x128xf32>
    %25 = tpu.matmul %22, %24, %cst_15 {dimension_numbers = #tpu.dot_dimension_numbers<[1], [0], [0], [1], [0, 0, 1, 1], [], []>} : vector<64x128xbf16>, vector<128x128xbf16>, vector<64x128xf32> -> vector<64x128xf32>
    %c1_16 = arith.constant 1 : index
    %c0_17 = arith.constant 0 : index
    %26 = vector.load %arg3[%c1_16, %c0_17] : memref<3x128xf32, #tpu.memory_space<vmem>>, vector<1x128xf32>
    %27 = vector.shape_cast %26 : vector<1x128xf32> to vector<128xf32>
    %28 = vector.shape_cast %27 : vector<128xf32> to vector<1x128xf32>
    %29 = vector.broadcast %28 : vector<1x128xf32> to vector<64x128xf32>
    %30 = arith.addf %25, %29 : vector<64x128xf32>
    %cst_18 = arith.constant 0.000000e+00 : f32
    %31 = vector.broadcast %cst_18 : f32 to vector<64x128xf32>
    %32 = arith.maximumf %30, %31 : vector<64x128xf32>
    %33 = arith.truncf %32 : vector<64x128xf32> to vector<64x128xbf16>
    %c1_19 = arith.constant 1 : index
    %c0_20 = arith.constant 0 : index
    %c0_21 = arith.constant 0 : index
    %34 = vector.load %arg4[%c1_19, %c0_20, %c0_21] : memref<3x128x128xbf16, #tpu.memory_space<vmem>>, vector<1x128x128xbf16>
    %35 = vector.shape_cast %34 : vector<1x128x128xbf16> to vector<128x128xbf16>
    %cst_22 = arith.constant dense<0.000000e+00> : vector<64x128xf32>
    %36 = tpu.matmul %33, %35, %cst_22 {dimension_numbers = #tpu.dot_dimension_numbers<[1], [0], [0], [1], [0, 0, 1, 1], [], []>} : vector<64x128xbf16>, vector<128x128xbf16>, vector<64x128xf32> -> vector<64x128xf32>
    %37 = arith.addf %21, %36 : vector<64x128xf32>
    %c1_23 = arith.constant 1 : index
    %c0_24 = arith.constant 0 : index
    %38 = vector.load %arg5[%c1_23, %c0_24] : memref<3x128xf32, #tpu.memory_space<vmem>>, vector<1x128xf32>
    %39 = vector.shape_cast %38 : vector<1x128xf32> to vector<128xf32>
    %40 = vector.shape_cast %39 : vector<128xf32> to vector<1x128xf32>
    %41 = vector.broadcast %40 : vector<1x128xf32> to vector<64x128xf32>
    %42 = arith.addf %37, %41 : vector<64x128xf32>
    %43 = arith.truncf %42 : vector<64x128xf32> to vector<64x128xbf16>
    %c2 = arith.constant 2 : index
    %c0_25 = arith.constant 0 : index
    %c0_26 = arith.constant 0 : index
    %44 = vector.load %arg2[%c2, %c0_25, %c0_26] : memref<3x128x128xbf16, #tpu.memory_space<vmem>>, vector<1x128x128xbf16>
    %45 = vector.shape_cast %44 : vector<1x128x128xbf16> to vector<128x128xbf16>
    %cst_27 = arith.constant dense<0.000000e+00> : vector<64x128xf32>
    %46 = tpu.matmul %43, %45, %cst_27 {dimension_numbers = #tpu.dot_dimension_numbers<[1], [0], [0], [1], [0, 0, 1, 1], [], []>} : vector<64x128xbf16>, vector<128x128xbf16>, vector<64x128xf32> -> vector<64x128xf32>
    %c2_28 = arith.constant 2 : index
    %c0_29 = arith.constant 0 : index
    %47 = vector.load %arg3[%c2_28, %c0_29] : memref<3x128xf32, #tpu.memory_space<vmem>>, vector<1x128xf32>
    %48 = vector.shape_cast %47 : vector<1x128xf32> to vector<128xf32>
    %49 = vector.shape_cast %48 : vector<128xf32> to vector<1x128xf32>
    %50 = vector.broadcast %49 : vector<1x128xf32> to vector<64x128xf32>
    %51 = arith.addf %46, %50 : vector<64x128xf32>
    %cst_30 = arith.constant 0.000000e+00 : f32
    %52 = vector.broadcast %cst_30 : f32 to vector<64x128xf32>
    %53 = arith.maximumf %51, %52 : vector<64x128xf32>
    %54 = arith.truncf %53 : vector<64x128xf32> to vector<64x128xbf16>
    %c2_31 = arith.constant 2 : index
    %c0_32 = arith.constant 0 : index
    %c0_33 = arith.constant 0 : index
    %55 = vector.load %arg4[%c2_31, %c0_32, %c0_33] : memref<3x128x128xbf16, #tpu.memory_space<vmem>>, vector<1x128x128xbf16>
    %56 = vector.shape_cast %55 : vector<1x128x128xbf16> to vector<128x128xbf16>
    %cst_34 = arith.constant dense<0.000000e+00> : vector<64x128xf32>
    %57 = tpu.matmul %54, %56, %cst_34 {dimension_numbers = #tpu.dot_dimension_numbers<[1], [0], [0], [1], [0, 0, 1, 1], [], []>} : vector<64x128xbf16>, vector<128x128xbf16>, vector<64x128xf32> -> vector<64x128xf32>
    %58 = arith.addf %42, %57 : vector<64x128xf32>
    %c2_35 = arith.constant 2 : index
    %c0_36 = arith.constant 0 : index
    %59 = vector.load %arg5[%c2_35, %c0_36] : memref<3x128xf32, #tpu.memory_space<vmem>>, vector<1x128xf32>
    %60 = vector.shape_cast %59 : vector<1x128xf32> to vector<128xf32>
    %61 = vector.shape_cast %60 : vector<128xf32> to vector<1x128xf32>
    %62 = vector.broadcast %61 : vector<1x128xf32> to vector<64x128xf32>
    %63 = arith.addf %58, %62 : vector<64x128xf32>
    %c0_37 = arith.constant 0 : index
    %c0_38 = arith.constant 0 : index
    %64 = vector.load %arg6[%c0_37, %c0_38] : memref<64x128xf32, #tpu.memory_space<vmem>>, vector<64x128xf32>
    tpu.vector_store %arg6[%c0_37, %c0_38], %63 {strides = array<i32>} : memref<64x128xf32, #tpu.memory_space<vmem>>, vector<64x128xf32>,
    return
  }
  func.func @transform_0(%arg0: i32) -> (i32, i32) {
    %c0_i32 = arith.constant 0 : i32
    %c0_i32_0 = arith.constant 0 : i32
    return %arg0, %c0_i32 : i32, i32
  }
  func.func @transform_1(%arg0: i32) -> (i32, i32, i32) {
    %c0_i32 = arith.constant 0 : i32
    %c0_i32_0 = arith.constant 0 : i32
    %c0_i32_1 = arith.constant 0 : i32
    %c0_i32_2 = arith.constant 0 : i32
    return %c0_i32, %c0_i32_0, %c0_i32_1 : i32, i32, i32
  }
  func.func @transform_2(%arg0: i32) -> (i32, i32) {
    %c0_i32 = arith.constant 0 : i32
    %c0_i32_0 = arith.constant 0 : i32
    %c0_i32_1 = arith.constant 0 : i32
    return %c0_i32, %c0_i32_0 : i32, i32
  }
  func.func @transform_3(%arg0: i32) -> (i32, i32, i32) {
    %c0_i32 = arith.constant 0 : i32
    %c0_i32_0 = arith.constant 0 : i32
    %c0_i32_1 = arith.constant 0 : i32
    %c0_i32_2 = arith.constant 0 : i32
    return %c0_i32, %c0_i32_0, %c0_i32_1 : i32, i32, i32
  }
  func.func @transform_4(%arg0: i32) -> (i32, i32) {
    %c0_i32 = arith.constant 0 : i32
    %c0_i32_0 = arith.constant 0 : i32
    %c0_i32_1 = arith.constant 0 : i32
    return %c0_i32, %c0_i32_0 : i32, i32
  }
  func.func @transform_5(%arg0: i32) -> (i32, i32) {
    %c0_i32 = arith.constant 0 : i32
    %c0_i32_0 = arith.constant 0 : i32
    return %arg0, %c0_i32 : i32, i32
  }
}

</mosaic_0001>

<llo_original>
// kernel: tpu_custom_call.1
$region0: #{tpu_custom_call.1}
  #allocation0 [shape = 'u32[]', space=smem, size = 0x4, offset = 0x4, fixed_abs, tag = 'smem constant byte address 0x4 - core index']
  #allocation1 [shape = 'u32[144,128]{1,0:T(1,128)}', space=vmem, size = 0x12000, scoped, tag = 'internal scratch']
  %s0 = inlined_call_operand.hbm [shape: f32[64,128], index: 0, kind: input, shape index: {}]
  %s1 = inlined_call_operand.hbm [shape: bf16[3,128,128], index: 1, kind: input, shape index: {}]
  %s2 = inlined_call_operand.vmem [shape: f32[3,128], index: 2, kind: input, shape index: {}]
  %s3 = inlined_call_operand.hbm [shape: bf16[3,128,128], index: 3, kind: input, shape index: {}]
  %s4 = inlined_call_operand.vmem [shape: f32[3,128], index: 4, kind: input, shape index: {}]
  %s5 = inlined_call_operand.hbm [shape: f32[64,128], index: 5, kind: output, shape index: {}]
  %s6 = sld [smem:[#allocation0]]
  $region42: #{tpu_custom_call.1} parent=0
    _
  %s8 = ssub.s32 1, %s6
  %s9 = scalar_select 0, %s8, %s6
  $region1: #{tpu_custom_call.1} parent=0
    #allocation2 [shape = 'u8[32768]{0}', space=vmem, size = 0x8000, scoped, tag = 'input window, operand 0, single buffered']
    #allocation3 [shape = 's32[1]{0}', space=sflag, size = 0x4, scoped, tag = 'scoped memory for tpu_custom_call.1']
    #allocation4 [shape = 's32[1]{0}', space=sflag, size = 0x4, scoped, tag = 'scoped memory for tpu_custom_call.1']
    #allocation5 [shape = 'u8[98304]{0}', space=vmem, size = 0x18000, scoped, tag = 'input window, operand 1, single buffered']
    #allocation6 [shape = 's32[1]{0}', space=sflag, size = 0x4, scoped, tag = 'scoped memory for tpu_custom_call.1']
    #allocation7 [shape = 'u8[98304]{0}', space=vmem, size = 0x18000, scoped, tag = 'input window, operand 3, single buffered']
    #allocation8 [shape = 'u8[32768]{0}', space=vmem, size = 0x8000, scoped, tag = 'output window, operand 0, single buffered']
    %10 = vsyncpa [#allocation3], 0
    %11 = vsyncpa [#allocation6], 0
    %12 = vsyncpa [#allocation4], 0
    // Predicated region
    $region2: #{tpu_custom_call.1} parent=1 // pred_check
      _
    $region3: #{tpu_custom_call.1} parent=1 // pred_check_branch
      %14 = sbr.rel (0) target = $region5
    $region4: #{tpu_custom_call.1} parent=1 // pred_region
      %s16 = ssub.s32 1024, 1024
      %17 = vsyncadd [#allocation3], %s16
      %s18 = sshll.u32 [#allocation2], 4
      %s19 = int_to_ptr.vmem [resolvable:$true] %s18
      %24 = dma.hbm_to_vmem [thread:$0]  %s0, 1024, %s19, [#allocation3], 128, 128, 8
    $region5: #{tpu_custom_call.1} parent=1 // pred_fallthru
      _
    // Predicated region
    $region6: #{tpu_custom_call.1} parent=1 // pred_check
      _
    $region7: #{tpu_custom_call.1} parent=1 // pred_check_branch
      %26 = sbr.rel (0) target = $region9
    $region8: #{tpu_custom_call.1} parent=1 // pred_region
      %s28 = ssub.s32 3072, 3072
      %29 = vsyncadd [#allocation6], %s28
      %s30 = sshll.u32 [#allocation5], 4
      %s31 = int_to_ptr.vmem [resolvable:$true] %s30
      %36 = dma.hbm_to_vmem [thread:$0]  %s1, 3072, %s31, [#allocation6], 64, 64, 4
    $region9: #{tpu_custom_call.1} parent=1 // pred_fallthru
      _
    // Predicated region
    $region10: #{tpu_custom_call.1} parent=1 // pred_check
      _
    $region11: #{tpu_custom_call.1} parent=1 // pred_check_branch
      %38 = sbr.rel (0) target = $region13
    $region12: #{tpu_custom_call.1} parent=1 // pred_region
      _
    $region13: #{tpu_custom_call.1} parent=1 // pred_fallthru
      _
    // Predicated region
    $region14: #{tpu_custom_call.1} parent=1 // pred_check
      _
    $region15: #{tpu_custom_call.1} parent=1 // pred_check_branch
      %40 = sbr.rel (0) target = $region17
    $region16: #{tpu_custom_call.1} parent=1 // pred_region
      %s42 = ssub.s32 3072, 3072
      %43 = vsyncadd [#allocation6], %s42
      %s44 = sshll.u32 [#allocation7], 4
      %s45 = int_to_ptr.vmem [resolvable:$true] %s44
      %50 = dma.hbm_to_vmem [thread:$0]  %s3, 3072, %s45, [#allocation6], 64, 64, 4
    $region17: #{tpu_custom_call.1} parent=1 // pred_fallthru
      _
    // Predicated region
    $region18: #{tpu_custom_call.1} parent=1 // pred_check
      _
    $region19: #{tpu_custom_call.1} parent=1 // pred_check_branch
      %52 = sbr.rel (0) target = $region21
    $region20: #{tpu_custom_call.1} parent=1 // pred_region
      _
    $region21: #{tpu_custom_call.1} parent=1 // pred_fallthru
      _
    // Predicated region
    $region22: #{tpu_custom_call.1} parent=1 // pred_check
      _
    $region23: #{tpu_custom_call.1} parent=1 // pred_check_branch
      %54 = sbr.rel (0) target = $region25
    $region24: #{tpu_custom_call.1} parent=1 // pred_region
      %55 = dma.done [#allocation3], 1024
    $region25: #{tpu_custom_call.1} parent=1 // pred_fallthru
      _
    // Predicated region
    $region26: #{tpu_custom_call.1} parent=1 // pred_check
      _
    $region27: #{tpu_custom_call.1} parent=1 // pred_check_branch
      %57 = sbr.rel (0) target = $region29
    $region28: #{tpu_custom_call.1} parent=1 // pred_region
      %58 = dma.done [#allocation6], 3072
    $region29: #{tpu_custom_call.1} parent=1 // pred_fallthru
      _
    // Predicated region
    $region30: #{tpu_custom_call.1} parent=1 // pred_check
      _
    $region31: #{tpu_custom_call.1} parent=1 // pred_check_branch
      %60 = sbr.rel (0) target = $region33
    $region32: #{tpu_custom_call.1} parent=1 // pred_region
      %61 = dma.done [#allocation6], 3072
    $region33: #{tpu_custom_call.1} parent=1 // pred_fallthru
      _
    %v63 = vld [vmem:[#allocation2] sm:$0xff]
    %v64 = vld [vmem:[#allocation2 + $0x8] sm:$0xff]
    %v65 = vld [vmem:[#allocation2 + $0x10] sm:$0xff]
    %v66 = vld [vmem:[#allocation2 + $0x18] sm:$0xff]
    %v67 = vld [vmem:[#allocation2 + $0x20] sm:$0xff]
    %v68 = vld [vmem:[#allocation2 + $0x28] sm:$0xff]
    %v69 = vld [vmem:[#allocation2 + $0x30] sm:$0xff]
    %v70 = vld [vmem:[#allocation2 + $0x38] sm:$0xff]
    %v71 = vpack.c.bf16 %v64, %v63
    %v72 = vpack.c.bf16 %v66, %v65
    %v73 = vpack.c.bf16 %v68, %v67
    %v74 = vpack.c.bf16 %v70, %v69
    %v75 = vld [vmem:[#allocation5] sm:$0xf]
    %v76 = vld [vmem:[#allocation5 + $0x4] sm:$0xf]
    %v77 = vld [vmem:[#allocation5 + $0x8] sm:$0xf]
    %v78 = vld [vmem:[#allocation5 + $0xc] sm:$0xf]
    %v79 = vld [vmem:[#allocation5 + $0x10] sm:$0xf]
    %v80 = vld [vmem:[#allocation5 + $0x14] sm:$0xf]
    %v81 = vld [vmem:[#allocation5 + $0x18] sm:$0xf]
    %v82 = vld [vmem:[#allocation5 + $0x1c] sm:$0xf]
    %v83 = vld [vmem:[#allocation5 + $0x20] sm:$0xf]
    %v84 = vld [vmem:[#allocation5 + $0x24] sm:$0xf]
    %v85 = vld [vmem:[#allocation5 + $0x28] sm:$0xf]
    %v86 = vld [vmem:[#allocation5 + $0x2c] sm:$0xf]
    %v87 = vld [vmem:[#allocation5 + $0x30] sm:$0xf]
    %v88 = vld [vmem:[#allocation5 + $0x34] sm:$0xf]
    %v89 = vld [vmem:[#allocation5 + $0x38] sm:$0xf]
    %v90 = vld [vmem:[#allocation5 + $0x3c] sm:$0xf]
    %v91 = vld [vmem:[%s2] sm:$0x1]
    %v92 = vlaneseq
    %v93 = vshrl.u32 %v92, 7
    %v94 = vsub.s32 0, %v93
    %v95 = vrot.slane %v91, %v94
    %v112 = vunpack.c.l.b16 %v75
    %v113 = vunpack.c.l.b16 %v76
    %v114 = vunpack.c.l.b16 %v77
    %v115 = vunpack.c.l.b16 %v78
    %v116 = vunpack.c.l.b16 %v79
    %v117 = vunpack.c.l.b16 %v80
    %v118 = vunpack.c.l.b16 %v81
    %v119 = vunpack.c.l.b16 %v82
    %v120 = vunpack.c.l.b16 %v83
    %v121 = vunpack.c.l.b16 %v84
    %v122 = vunpack.c.l.b16 %v85
    %v123 = vunpack.c.l.b16 %v86
    %v124 = vunpack.c.l.b16 %v87
    %v125 = vunpack.c.l.b16 %v88
    %v126 = vunpack.c.l.b16 %v89
    %v127 = vunpack.c.l.b16 %v90
    %v128 = vpack.c.b16 %v113, %v112
    %v129 = vpack.c.b16 %v115, %v114
    %v130 = vpack.c.b16 %v117, %v116
    %v131 = vpack.c.b16 %v119, %v118
    %v132 = vpack.c.b16 %v121, %v120
    %v133 = vpack.c.b16 %v123, %v122
    %v134 = vpack.c.b16 %v125, %v124
    %v135 = vpack.c.b16 %v127, %v126
    %144 = vmatprep.subr.bf16.mxu0 0
    %145 = vmatpush1.bf16.msra.mxu0 %v128
    %146 = vmatprep.subr.bf16.mxu0 0
    %147 = vmatpush1.bf16.msra.mxu0 %v129
    %148 = vmatprep.subr.bf16.mxu0 0
    %149 = vmatpush1.bf16.msra.mxu0 %v130
    %150 = vmatprep.subr.bf16.mxu0 0
    %151 = vmatpush1.bf16.msra.mxu0 %v131
    %152 = vmatprep.subr.bf16.mxu0 0
    %153 = vmatpush1.bf16.msra.mxu0 %v132
    %154 = vmatprep.subr.bf16.mxu0 0
    %155 = vmatpush1.bf16.msra.mxu0 %v133
    %156 = vmatprep.subr.bf16.mxu0 0
    %157 = vmatpush1.bf16.msra.mxu0 %v134
    %158 = vmatprep.subr.bf16.mxu0 0
    %159 = vmatpush1.bf16.msra.mxu0 %v135
    %160 = vmatprep.subr.bf16.mxu0 0
    %161 = vmatpush1.bf16.msra.mxu0 0
    %162 = vmatprep.subr.bf16.mxu0 0
    %163 = vmatpush1.bf16.msra.mxu0 0
    %164 = vmatprep.subr.bf16.mxu0 0
    %165 = vmatpush1.bf16.msra.mxu0 0
    %166 = vmatprep.subr.bf16.mxu0 0
    %167 = vmatpush1.bf16.msra.mxu0 0
    %168 = vmatprep.subr.bf16.mxu0 0
    %169 = vmatpush1.bf16.msra.mxu0 0
    %170 = vmatprep.subr.bf16.mxu0 0
    %171 = vmatpush1.bf16.msra.mxu0 0
    %172 = vmatprep.subr.bf16.mxu0 0
    %173 = vmatpush1.bf16.msra.mxu0 0
    %174 = vmatprep.subr.bf16.mxu0 0
    %175 = vmatpush1.bf16.msra.mxu0 0
    %176 = vmatprep.mubr.bf16.mxu0 0
    %177 = vmatmul.mubr.bf16.gmra.mrb[0].mxu0 %v71
    %v178 = vpop.f32.mrb[0].mxu0
    %v179 = vadd.f32 %v95, %v178
    %v180 = vpop.f32.mrb[0].mxu0
    %v181 = vpop.f32.mrb[0].mxu0
    %v182 = vadd.f32 %v95, %v181
    %v183 = vpop.f32.mrb[0].mxu0
    %184 = vmatprep.mubr.bf16.mxu0 0
    %185 = vmatmul.mubr.bf16.gmra.mrb[0].mxu0 %v72
    %v186 = vpop.f32.mrb[0].mxu0
    %v187 = vadd.f32 %v95, %v186
    %v188 = vpop.f32.mrb[0].mxu0
    %v189 = vpop.f32.mrb[0].mxu0
    %v190 = vadd.f32 %v95, %v189
    %v191 = vpop.f32.mrb[0].mxu0
    %192 = vmatprep.mubr.bf16.mxu0 0
    %193 = vmatmul.mubr.bf16.gmra.mrb[0].mxu0 %v73
    %v194 = vpop.f32.mrb[0].mxu0
    %v195 = vadd.f32 %v95, %v194
    %v196 = vpop.f32.mrb[0].mxu0
    %v197 = vpop.f32.mrb[0].mxu0
    %v198 = vadd.f32 %v95, %v197
    %v199 = vpop.f32.mrb[0].mxu0
    %200 = vmatprep.mubr.bf16.mxu0 0
    %201 = vmatmul.mubr.bf16.gmra.mrb[0].mxu0 %v74
    %v202 = vpop.f32.mrb[0].mxu0
    %v203 = vadd.f32 %v95, %v202
    %v204 = vpop.f32.mrb[0].mxu0
    %v205 = vpop.f32.mrb[0].mxu0
    %v206 = vadd.f32 %v95, %v205
    %v207 = vpop.f32.mrb[0].mxu0
    %208 = vdwg.mxu0
    %v209 = vmax.f32 %v179, 0.0
    %v210 = vmax.f32 %v182, 0.0
    %v211 = vmax.f32 %v187, 0.0
    %v212 = vmax.f32 %v190, 0.0
    %v213 = vmax.f32 %v195, 0.0
    %v214 = vmax.f32 %v198, 0.0
    %v215 = vmax.f32 %v203, 0.0
    %v216 = vmax.f32 %v206, 0.0
    %v217 = vpack.c.bf16 %v210, %v209
    %v218 = vpack.c.bf16 %v212, %v211
    %v219 = vpack.c.bf16 %v214, %v213
    %v220 = vpack.c.bf16 %v216, %v215
    %v221 = vld [vmem:[#allocation7] sm:$0xf]
    %v222 = vld [vmem:[#allocation7 + $0x4] sm:$0xf]
    %v223 = vld [vmem:[#allocation7 + $0x8] sm:$0xf]
    %v224 = vld [vmem:[#allocation7 + $0xc] sm:$0xf]
    %v225 = vld [vmem:[#allocation7 + $0x10] sm:$0xf]
    %v226 = vld [vmem:[#allocation7 + $0x14] sm:$0xf]
    %v227 = vld [vmem:[#allocation7 + $0x18] sm:$0xf]
    %v228 = vld [vmem:[#allocation7 + $0x1c] sm:$0xf]
    %v229 = vld [vmem:[#allocation7 + $0x20] sm:$0xf]
    %v230 = vld [vmem:[#allocation7 + $0x24] sm:$0xf]
    %v231 = vld [vmem:[#allocation7 + $0x28] sm:$0xf]
    %v232 = vld [vmem:[#allocation7 + $0x2c] sm:$0xf]
    %v233 = vld [vmem:[#allocation7 + $0x30] sm:$0xf]
    %v234 = vld [vmem:[#allocation7 + $0x34] sm:$0xf]
    %v235 = vld [vmem:[#allocation7 + $0x38] sm:$0xf]
    %v236 = vld [vmem:[#allocation7 + $0x3c] sm:$0xf]
    %v253 = vunpack.c.l.b16 %v221
    %v254 = vunpack.c.l.b16 %v222
    %v255 = vunpack.c.l.b16 %v223
    %v256 = vunpack.c.l.b16 %v224
    %v257 = vunpack.c.l.b16 %v225
    %v258 = vunpack.c.l.b16 %v226
    %v259 = vunpack.c.l.b16 %v227
    %v260 = vunpack.c.l.b16 %v228
    %v261 = vunpack.c.l.b16 %v229
    %v262 = vunpack.c.l.b16 %v230
    %v263 = vunpack.c.l.b16 %v231
    %v264 = vunpack.c.l.b16 %v232
    %v265 = vunpack.c.l.b16 %v233
    %v266 = vunpack.c.l.b16 %v234
    %v267 = vunpack.c.l.b16 %v235
    %v268 = vunpack.c.l.b16 %v236
    %v269 = vpack.c.b16 %v254, %v253
    %v270 = vpack.c.b16 %v256, %v255
    %v271 = vpack.c.b16 %v258, %v257
    %v272 = vpack.c.b16 %v260, %v259
    %v273 = vpack.c.b16 %v262, %v261
    %v274 = vpack.c.b16 %v264, %v263
    %v275 = vpack.c.b16 %v266, %v265
    %v276 = vpack.c.b16 %v268, %v267
    %285 = vmatprep.subr.bf16.mxu0 0
    %286 = vmatpush1.bf16.msra.mxu0 %v269
    %287 = vmatprep.subr.bf16.mxu0 0
    %288 = vmatpush1.bf16.msra.mxu0 %v270
    %289 = vmatprep.subr.bf16.mxu0 0
    %290 = vmatpush1.bf16.msra.mxu0 %v271
    %291 = vmatprep.subr.bf16.mxu0 0
    %292 = vmatpush1.bf16.msra.mxu0 %v272
    %293 = vmatprep.subr.bf16.mxu0 0
    %294 = vmatpush1.bf16.msra.mxu0 %v273
    %295 = vmatprep.subr.bf16.mxu0 0
    %296 = vmatpush1.bf16.msra.mxu0 %v274
    %297 = vmatprep.subr.bf16.mxu0 0
    %298 = vmatpush1.bf16.msra.mxu0 %v275
    %299 = vmatprep.subr.bf16.mxu0 0
    %300 = vmatpush1.bf16.msra.mxu0 %v276
    %301 = vmatprep.subr.bf16.mxu0 0
    %302 = vmatpush1.bf16.msra.mxu0 0
    %303 = vmatprep.subr.bf16.mxu0 0
    %304 = vmatpush1.bf16.msra.mxu0 0
    %305 = vmatprep.subr.bf16.mxu0 0
    %306 = vmatpush1.bf16.msra.mxu0 0
    %307 = vmatprep.subr.bf16.mxu0 0
    %308 = vmatpush1.bf16.msra.mxu0 0
    %309 = vmatprep.subr.bf16.mxu0 0
    %310 = vmatpush1.bf16.msra.mxu0 0
    %311 = vmatprep.subr.bf16.mxu0 0
    %312 = vmatpush1.bf16.msra.mxu0 0
    %313 = vmatprep.subr.bf16.mxu0 0
    %314 = vmatpush1.bf16.msra.mxu0 0
    %315 = vmatprep.subr.bf16.mxu0 0
    %316 = vmatpush1.bf16.msra.mxu0 0
    %317 = vmatprep.mubr.bf16.mxu0 0
    %318 = vmatmul.mubr.bf16.gmra.mrb[0].mxu0 %v217
    %v319 = vpop.f32.mrb[0].mxu0
    %v320 = vadd.f32 0.0, %v319
    %v321 = vpop.f32.mrb[0].mxu0
    %v322 = vpop.f32.mrb[0].mxu0
    %v323 = vadd.f32 0.0, %v322
    %v324 = vpop.f32.mrb[0].mxu0
    %325 = vmatprep.mubr.bf16.mxu0 0
    %326 = vmatmul.mubr.bf16.gmra.mrb[0].mxu0 %v218
    %v327 = vpop.f32.mrb[0].mxu0
    %v328 = vadd.f32 0.0, %v327
    %v329 = vpop.f32.mrb[0].mxu0
    %v330 = vpop.f32.mrb[0].mxu0
    %v331 = vadd.f32 0.0, %v330
    %v332 = vpop.f32.mrb[0].mxu0
    %333 = vmatprep.mubr.bf16.mxu0 0
    %334 = vmatmul.mubr.bf16.gmra.mrb[0].mxu0 %v219
    %v335 = vpop.f32.mrb[0].mxu0
    %v336 = vadd.f32 0.0, %v335
    %v337 = vpop.f32.mrb[0].mxu0
    %v338 = vpop.f32.mrb[0].mxu0
    %v339 = vadd.f32 0.0, %v338
    %v340 = vpop.f32.mrb[0].mxu0
    %341 = vmatprep.mubr.bf16.mxu0 0
    %342 = vmatmul.mubr.bf16.gmra.mrb[0].mxu0 %v220
    %v343 = vpop.f32.mrb[0].mxu0
    %v344 = vadd.f32 0.0, %v343
    %v345 = vpop.f32.mrb[0].mxu0
    %v346 = vpop.f32.mrb[0].mxu0
    %v347 = vadd.f32 0.0, %v346
    %v348 = vpop.f32.mrb[0].mxu0
    %349 = vdwg.mxu0
    %v350 = vadd.f32 %v63, %v320
    %v351 = vadd.f32 %v64, %v323
    %v352 = vadd.f32 %v65, %v328
    %v353 = vadd.f32 %v66, %v331
    %v354 = vadd.f32 %v67, %v336
    %v355 = vadd.f32 %v68, %v339
    %v356 = vadd.f32 %v69, %v344
    %v357 = vadd.f32 %v70, %v347
    %v358 = vld [vmem:[%s4] sm:$0x1]
    %v359 = vlaneseq
    %v360 = vshrl.u32 %v359, 7
    %v361 = vsub.s32 0, %v360
    %v362 = vrot.slane %v358, %v361
    %v363 = vadd.f32 %v350, %v362
    %v364 = vadd.f32 %v351, %v362
    %v365 = vadd.f32 %v352, %v362
    %v366 = vadd.f32 %v353, %v362
    %v367 = vadd.f32 %v354, %v362
    %v368 = vadd.f32 %v355, %v362
    %v369 = vadd.f32 %v356, %v362
    %v370 = vadd.f32 %v357, %v362
    %v371 = vpack.c.bf16 %v364, %v363
    %v372 = vpack.c.bf16 %v366, %v365
    %v373 = vpack.c.bf16 %v368, %v367
    %v374 = vpack.c.bf16 %v370, %v369
    %s375 = scalar_lea.vmem [#allocation5], 64
    %v376 = vld [vmem:[%s375] sm:$0xf]
    %v377 = vld [vmem:[%s375 + $0x4] sm:$0xf]
    %v378 = vld [vmem:[%s375 + $0x8] sm:$0xf]
    %v379 = vld [vmem:[%s375 + $0xc] sm:$0xf]
    %v380 = vld [vmem:[%s375 + $0x10] sm:$0xf]
    %v381 = vld [vmem:[%s375 + $0x14] sm:$0xf]
    %v382 = vld [vmem:[%s375 + $0x18] sm:$0xf]
    %v383 = vld [vmem:[%s375 + $0x1c] sm:$0xf]
    %v384 = vld [vmem:[%s375 + $0x20] sm:$0xf]
    %v385 = vld [vmem:[%s375 + $0x24] sm:$0xf]
    %v386 = vld [vmem:[%s375 + $0x28] sm:$0xf]
    %v387 = vld [vmem:[%s375 + $0x2c] sm:$0xf]
    %v388 = vld [vmem:[%s375 + $0x30] sm:$0xf]
    %v389 = vld [vmem:[%s375 + $0x34] sm:$0xf]
    %v390 = vld [vmem:[%s375 + $0x38] sm:$0xf]
    %v391 = vld [vmem:[%s375 + $0x3c] sm:$0xf]
    %v392 = vld [vmem:[%s2 + $0x1] sm:$0x1]
    %v393 = vlaneseq
    %v394 = vshrl.u32 %v393, 7
    %v395 = vsub.s32 0, %v394
    %v396 = vrot.slane %v392, %v395
    %v413 = vunpack.c.l.b16 %v376
    %v414 = vunpack.c.l.b16 %v377
    %v415 = vunpack.c.l.b16 %v378
    %v416 = vunpack.c.l.b16 %v379
    %v417 = vunpack.c.l.b16 %v380
    %v418 = vunpack.c.l.b16 %v381
    %v419 = vunpack.c.l.b16 %v382
    %v420 = vunpack.c.l.b16 %v383
    %v421 = vunpack.c.l.b16 %v384
    %v422 = vunpack.c.l.b16 %v385
    %v423 = vunpack.c.l.b16 %v386
    %v424 = vunpack.c.l.b16 %v387
    %v425 = vunpack.c.l.b16 %v388
    %v426 = vunpack.c.l.b16 %v389
    %v427 = vunpack.c.l.b16 %v390
    %v428 = vunpack.c.l.b16 %v391
    %v429 = vpack.c.b16 %v414, %v413
    %v430 = vpack.c.b16 %v416, %v415
    %v431 = vpack.c.b16 %v418, %v417
    %v432 = vpack.c.b16 %v420, %v419
    %v433 = vpack.c.b16 %v422, %v421
    %v434 = vpack.c.b16 %v424, %v423
    %v435 = vpack.c.b16 %v426, %v425
    %v436 = vpack.c.b16 %v428, %v427
    %445 = vmatprep.subr.bf16.mxu0 0
    %446 = vmatpush1.bf16.msra.mxu0 %v429
    %447 = vmatprep.subr.bf16.mxu0 0
    %448 = vmatpush1.bf16.msra.mxu0 %v430
    %449 = vmatprep.subr.bf16.mxu0 0
    %450 = vmatpush1.bf16.msra.mxu0 %v431
    %451 = vmatprep.subr.bf16.mxu0 0
    %452 = vmatpush1.bf16.msra.mxu0 %v432
    %453 = vmatprep.subr.bf16.mxu0 0
    %454 = vmatpush1.bf16.msra.mxu0 %v433
    %455 = vmatprep.subr.bf16.mxu0 0
    %456 = vmatpush1.bf16.msra.mxu0 %v434
    %457 = vmatprep.subr.bf16.mxu0 0
    %458 = vmatpush1.bf16.msra.mxu0 %v435
    %459 = vmatprep.subr.bf16.mxu0 0
    %460 = vmatpush1.bf16.msra.mxu0 %v436
    %461 = vmatprep.subr.bf16.mxu0 0
    %462 = vmatpush1.bf16.msra.mxu0 0
    %463 = vmatprep.subr.bf16.mxu0 0
    %464 = vmatpush1.bf16.msra.mxu0 0
    %465 = vmatprep.subr.bf16.mxu0 0
    %466 = vmatpush1.bf16.msra.mxu0 0
    %467 = vmatprep.subr.bf16.mxu0 0
    %468 = vmatpush1.bf16.msra.mxu0 0
    %469 = vmatprep.subr.bf16.mxu0 0
    %470 = vmatpush1.bf16.msra.mxu0 0
    %471 = vmatprep.subr.bf16.mxu0 0
    %472 = vmatpush1.bf16.msra.mxu0 0
    %473 = vmatprep.subr.bf16.mxu0 0
    %474 = vmatpush1.bf16.msra.mxu0 0
    %475 = vmatprep.subr.bf16.mxu0 0
    %476 = vmatpush1.bf16.msra.mxu0 0
    %477 = vmatprep.mubr.bf16.mxu0 0
    %478 = vmatmul.mubr.bf16.gmra.mrb[0].mxu0 %v371
    %v479 = vpop.f32.mrb[0].mxu0
    %v480 = vadd.f32 %v396, %v479
    %v481 = vpop.f32.mrb[0].mxu0
    %v482 = vpop.f32.mrb[0].mxu0
    %v483 = vadd.f32 %v396, %v482
    %v484 = vpop.f32.mrb[0].mxu0
    %485 = vmatprep.mubr.bf16.mxu0 0
    %486 = vmatmul.mubr.bf16.gmra.mrb[0].mxu0 %v372
    %v487 = vpop.f32.mrb[0].mxu0
    %v488 = vadd.f32 %v396, %v487
    %v489 = vpop.f32.mrb[0].mxu0
    %v490 = vpop.f32.mrb[0].mxu0
    %v491 = vadd.f32 %v396, %v490
    %v492 = vpop.f32.mrb[0].mxu0
    %493 = vmatprep.mubr.bf16.mxu0 0
    %494 = vmatmul.mubr.bf16.gmra.mrb[0].mxu0 %v373
    %v495 = vpop.f32.mrb[0].mxu0
    %v496 = vadd.f32 %v396, %v495
    %v497 = vpop.f32.mrb[0].mxu0
    %v498 = vpop.f32.mrb[0].mxu0
    %v499 = vadd.f32 %v396, %v498
    %v500 = vpop.f32.mrb[0].mxu0
    %501 = vmatprep.mubr.bf16.mxu0 0
    %502 = vmatmul.mubr.bf16.gmra.mrb[0].mxu0 %v374
    %v503 = vpop.f32.mrb[0].mxu0
    %v504 = vadd.f32 %v396, %v503
    %v505 = vpop.f32.mrb[0].mxu0
    %v506 = vpop.f32.mrb[0].mxu0
    %v507 = vadd.f32 %v396, %v506
    %v508 = vpop.f32.mrb[0].mxu0
    %509 = vdwg.mxu0
    %v510 = vmax.f32 %v480, 0.0
    %v511 = vmax.f32 %v483, 0.0
    %v512 = vmax.f32 %v488, 0.0
    %v513 = vmax.f32 %v491, 0.0
    %v514 = vmax.f32 %v496, 0.0
    %v515 = vmax.f32 %v499, 0.0
    %v516 = vmax.f32 %v504, 0.0
    %v517 = vmax.f32 %v507, 0.0
    %v518 = vpack.c.bf16 %v511, %v510
    %v519 = vpack.c.bf16 %v513, %v512
    %v520 = vpack.c.bf16 %v515, %v514
    %v521 = vpack.c.bf16 %v517, %v516
    %s522 = scalar_lea.vmem [#allocation7], 64
    %v523 = vld [vmem:[%s522] sm:$0xf]
    %v524 = vld [vmem:[%s522 + $0x4] sm:$0xf]
    %v525 = vld [vmem:[%s522 + $0x8] sm:$0xf]
    %v526 = vld [vmem:[%s522 + $0xc] sm:$0xf]
    %v527 = vld [vmem:[%s522 + $0x10] sm:$0xf]
    %v528 = vld [vmem:[%s522 + $0x14] sm:$0xf]
    %v529 = vld [vmem:[%s522 + $0x18] sm:$0xf]
    %v530 = vld [vmem:[%s522 + $0x1c] sm:$0xf]
    %v531 = vld [vmem:[%s522 + $0x20] sm:$0xf]
    %v532 = vld [vmem:[%s522 + $0x24] sm:$0xf]
    %v533 = vld [vmem:[%s522 + $0x28] sm:$0xf]
    %v534 = vld [vmem:[%s522 + $0x2c] sm:$0xf]
    %v535 = vld [vmem:[%s522 + $0x30] sm:$0xf]
    %v536 = vld [vmem:[%s522 + $0x34] sm:$0xf]
    %v537 = vld [vmem:[%s522 + $0x38] sm:$0xf]
    %v538 = vld [vmem:[%s522 + $0x3c] sm:$0xf]
    %v555 = vunpack.c.l.b16 %v523
    %v556 = vunpack.c.l.b16 %v524
    %v557 = vunpack.c.l.b16 %v525
    %v558 = vunpack.c.l.b16 %v526
    %v559 = vunpack.c.l.b16 %v527
    %v560 = vunpack.c.l.b16 %v528
    %v561 = vunpack.c.l.b16 %v529
    %v562 = vunpack.c.l.b16 %v530
    %v563 = vunpack.c.l.b16 %v531
    %v564 = vunpack.c.l.b16 %v532
    %v565 = vunpack.c.l.b16 %v533
    %v566 = vunpack.c.l.b16 %v534
    %v567 = vunpack.c.l.b16 %v535
    %v568 = vunpack.c.l.b16 %v536
    %v569 = vunpack.c.l.b16 %v537
    %v570 = vunpack.c.l.b16 %v538
    %v571 = vpack.c.b16 %v556, %v555
    %v572 = vpack.c.b16 %v558, %v557
    %v573 = vpack.c.b16 %v560, %v559
    %v574 = vpack.c.b16 %v562, %v561
    %v575 = vpack.c.b16 %v564, %v563
    %v576 = vpack.c.b16 %v566, %v565
    %v577 = vpack.c.b16 %v568, %v567
    %v578 = vpack.c.b16 %v570, %v569
    %587 = vmatprep.subr.bf16.mxu0 0
    %588 = vmatpush1.bf16.msra.mxu0 %v571
    %589 = vmatprep.subr.bf16.mxu0 0
    %590 = vmatpush1.bf16.msra.mxu0 %v572
    %591 = vmatprep.subr.bf16.mxu0 0
    %592 = vmatpush1.bf16.msra.mxu0 %v573
    %593 = vmatprep.subr.bf16.mxu0 0
    %594 = vmatpush1.bf16.msra.mxu0 %v574
    %595 = vmatprep.subr.bf16.mxu0 0
    %596 = vmatpush1.bf16.msra.mxu0 %v575
    %597 = vmatprep.subr.bf16.mxu0 0
    %598 = vmatpush1.bf16.msra.mxu0 %v576
    %599 = vmatprep.subr.bf16.mxu0 0
    %600 = vmatpush1.bf16.msra.mxu0 %v577
    %601 = vmatprep.subr.bf16.mxu0 0
    %602 = vmatpush1.bf16.msra.mxu0 %v578
    %603 = vmatprep.subr.bf16.mxu0 0
    %604 = vmatpush1.bf16.msra.mxu0 0
    %605 = vmatprep.subr.bf16.mxu0 0
    %606 = vmatpush1.bf16.msra.mxu0 0
    %607 = vmatprep.subr.bf16.mxu0 0
    %608 = vmatpush1.bf16.msra.mxu0 0
    %609 = vmatprep.subr.bf16.mxu0 0
    %610 = vmatpush1.bf16.msra.mxu0 0
    %611 = vmatprep.subr.bf16.mxu0 0
    %612 = vmatpush1.bf16.msra.mxu0 0
    %613 = vmatprep.subr.bf16.mxu0 0
    %614 = vmatpush1.bf16.msra.mxu0 0
    %615 = vmatprep.subr.bf16.mxu0 0
    %616 = vmatpush1.bf16.msra.mxu0 0
    %617 = vmatprep.subr.bf16.mxu0 0
    %618 = vmatpush1.bf16.msra.mxu0 0
    %619 = vmatprep.mubr.bf16.mxu0 0
    %620 = vmatmul.mubr.bf16.gmra.mrb[0].mxu0 %v518
    %v621 = vpop.f32.mrb[0].mxu0
    %v622 = vadd.f32 0.0, %v621
    %v623 = vpop.f32.mrb[0].mxu0
    %v624 = vpop.f32.mrb[0].mxu0
    %v625 = vadd.f32 0.0, %v624
    %v626 = vpop.f32.mrb[0].mxu0
    %627 = vmatprep.mubr.bf16.mxu0 0
    %628 = vmatmul.mubr.bf16.gmra.mrb[0].mxu0 %v519
    %v629 = vpop.f32.mrb[0].mxu0
    %v630 = vadd.f32 0.0, %v629
    %v631 = vpop.f32.mrb[0].mxu0
    %v632 = vpop.f32.mrb[0].mxu0
    %v633 = vadd.f32 0.0, %v632
    %v634 = vpop.f32.mrb[0].mxu0
    %635 = vmatprep.mubr.bf16.mxu0 0
    %636 = vmatmul.mubr.bf16.gmra.mrb[0].mxu0 %v520
    %v637 = vpop.f32.mrb[0].mxu0
    %v638 = vadd.f32 0.0, %v637
    %v639 = vpop.f32.mrb[0].mxu0
    %v640 = vpop.f32.mrb[0].mxu0
    %v641 = vadd.f32 0.0, %v640
    %v642 = vpop.f32.mrb[0].mxu0
    %643 = vmatprep.mubr.bf16.mxu0 0
    %644 = vmatmul.mubr.bf16.gmra.mrb[0].mxu0 %v521
    %v645 = vpop.f32.mrb[0].mxu0
    %v646 = vadd.f32 0.0, %v645
    %v647 = vpop.f32.mrb[0].mxu0
    %v648 = vpop.f32.mrb[0].mxu0
    %v649 = vadd.f32 0.0, %v648
    %v650 = vpop.f32.mrb[0].mxu0
    %651 = vdwg.mxu0
    %v652 = vadd.f32 %v363, %v622
    %v653 = vadd.f32 %v364, %v625
    %v654 = vadd.f32 %v365, %v630
    %v655 = vadd.f32 %v366, %v633
    %v656 = vadd.f32 %v367, %v638
    %v657 = vadd.f32 %v368, %v641
    %v658 = vadd.f32 %v369, %v646
    %v659 = vadd.f32 %v370, %v649
    %v660 = vld [vmem:[%s4 + $0x1] sm:$0x1]
    %v661 = vlaneseq
    %v662 = vshrl.u32 %v661, 7
    %v663 = vsub.s32 0, %v662
    %v664 = vrot.slane %v660, %v663
    %v665 = vadd.f32 %v652, %v664
    %v666 = vadd.f32 %v653, %v664
    %v667 = vadd.f32 %v654, %v664
    %v668 = vadd.f32 %v655, %v664
    %v669 = vadd.f32 %v656, %v664
    %v670 = vadd.f32 %v657, %v664
    %v671 = vadd.f32 %v658, %v664
    %v672 = vadd.f32 %v659, %v664
    %v673 = vpack.c.bf16 %v666, %v665
    %v674 = vpack.c.bf16 %v668, %v667
    %v675 = vpack.c.bf16 %v670, %v669
    %v676 = vpack.c.bf16 %v672, %v671
    %s677 = scalar_lea.vmem [#allocation5], 128
    %v678 = vld [vmem:[%s677] sm:$0xf]
    %v679 = vld [vmem:[%s677 + $0x4] sm:$0xf]
    %v680 = vld [vmem:[%s677 + $0x8] sm:$0xf]
    %v681 = vld [vmem:[%s677 + $0xc] sm:$0xf]
    %v682 = vld [vmem:[%s677 + $0x10] sm:$0xf]
    %v683 = vld [vmem:[%s677 + $0x14] sm:$0xf]
    %v684 = vld [vmem:[%s677 + $0x18] sm:$0xf]
    %v685 = vld [vmem:[%s677 + $0x1c] sm:$0xf]
    %v686 = vld [vmem:[%s677 + $0x20] sm:$0xf]
    %v687 = vld [vmem:[%s677 + $0x24] sm:$0xf]
    %v688 = vld [vmem:[%s677 + $0x28] sm:$0xf]
    %v689 = vld [vmem:[%s677 + $0x2c] sm:$0xf]
    %v690 = vld [vmem:[%s677 + $0x30] sm:$0xf]
    %v691 = vld [vmem:[%s677 + $0x34] sm:$0xf]
    %v692 = vld [vmem:[%s677 + $0x38] sm:$0xf]
    %v693 = vld [vmem:[%s677 + $0x3c] sm:$0xf]
    %v694 = vld [vmem:[%s2 + $0x2] sm:$0x1]
    %v695 = vlaneseq
    %v696 = vshrl.u32 %v695, 7
    %v697 = vsub.s32 0, %v696
    %v698 = vrot.slane %v694, %v697
    %v715 = vunpack.c.l.b16 %v678
    %v716 = vunpack.c.l.b16 %v679
    %v717 = vunpack.c.l.b16 %v680
    %v718 = vunpack.c.l.b16 %v681
    %v719 = vunpack.c.l.b16 %v682
    %v720 = vunpack.c.l.b16 %v683
    %v721 = vunpack.c.l.b16 %v684
    %v722 = vunpack.c.l.b16 %v685
    %v723 = vunpack.c.l.b16 %v686
    %v724 = vunpack.c.l.b16 %v687
    %v725 = vunpack.c.l.b16 %v688
    %v726 = vunpack.c.l.b16 %v689
    %v727 = vunpack.c.l.b16 %v690
    %v728 = vunpack.c.l.b16 %v691
    %v729 = vunpack.c.l.b16 %v692
    %v730 = vunpack.c.l.b16 %v693
    %v731 = vpack.c.b16 %v716, %v715
    %v732 = vpack.c.b16 %v718, %v717
    %v733 = vpack.c.b16 %v720, %v719
    %v734 = vpack.c.b16 %v722, %v721
    %v735 = vpack.c.b16 %v724, %v723
    %v736 = vpack.c.b16 %v726, %v725
    %v737 = vpack.c.b16 %v728, %v727
    %v738 = vpack.c.b16 %v730, %v729
    %747 = vmatprep.subr.bf16.mxu0 0
    %748 = vmatpush1.bf16.msra.mxu0 %v731
    %749 = vmatprep.subr.bf16.mxu0 0
    %750 = vmatpush1.bf16.msra.mxu0 %v732
    %751 = vmatprep.subr.bf16.mxu0 0
    %752 = vmatpush1.bf16.msra.mxu0 %v733
    %753 = vmatprep.subr.bf16.mxu0 0
    %754 = vmatpush1.bf16.msra.mxu0 %v734
    %755 = vmatprep.subr.bf16.mxu0 0
    %756 = vmatpush1.bf16.msra.mxu0 %v735
    %757 = vmatprep.subr.bf16.mxu0 0
    %758 = vmatpush1.bf16.msra.mxu0 %v736
    %759 = vmatprep.subr.bf16.mxu0 0
    %760 = vmatpush1.bf16.msra.mxu0 %v737
    %761 = vmatprep.subr.bf16.mxu0 0
    %762 = vmatpush1.bf16.msra.mxu0 %v738
    %763 = vmatprep.subr.bf16.mxu0 0
    %764 = vmatpush1.bf16.msra.mxu0 0
    %765 = vmatprep.subr.bf16.mxu0 0
    %766 = vmatpush1.bf16.msra.mxu0 0
    %767 = vmatprep.subr.bf16.mxu0 0
    %768 = vmatpush1.bf16.msra.mxu0 0
    %769 = vmatprep.subr.bf16.mxu0 0
    %770 = vmatpush1.bf16.msra.mxu0 0
    %771 = vmatprep.subr.bf16.mxu0 0
    %772 = vmatpush1.bf16.msra.mxu0 0
    %773 = vmatprep.subr.bf16.mxu0 0
    %774 = vmatpush1.bf16.msra.mxu0 0
    %775 = vmatprep.subr.bf16.mxu0 0
    %776 = vmatpush1.bf16.msra.mxu0 0
    %777 = vmatprep.subr.bf16.mxu0 0
    %778 = vmatpush1.bf16.msra.mxu0 0
    %779 = vmatprep.mubr.bf16.mxu0 0
    %780 = vmatmul.mubr.bf16.gmra.mrb[0].mxu0 %v673
    %v781 = vpop.f32.mrb[0].mxu0
    %v782 = vadd.f32 %v698, %v781
    %v783 = vpop.f32.mrb[0].mxu0
    %v784 = vpop.f32.mrb[0].mxu0
    %v785 = vadd.f32 %v698, %v784
    %v786 = vpop.f32.mrb[0].mxu0
    %787 = vmatprep.mubr.bf16.mxu0 0
    %788 = vmatmul.mubr.bf16.gmra.mrb[0].mxu0 %v674
    %v789 = vpop.f32.mrb[0].mxu0
    %v790 = vadd.f32 %v698, %v789
    %v791 = vpop.f32.mrb[0].mxu0
    %v792 = vpop.f32.mrb[0].mxu0
    %v793 = vadd.f32 %v698, %v792
    %v794 = vpop.f32.mrb[0].mxu0
    %795 = vmatprep.mubr.bf16.mxu0 0
    %796 = vmatmul.mubr.bf16.gmra.mrb[0].mxu0 %v675
    %v797 = vpop.f32.mrb[0].mxu0
    %v798 = vadd.f32 %v698, %v797
    %v799 = vpop.f32.mrb[0].mxu0
    %v800 = vpop.f32.mrb[0].mxu0
    %v801 = vadd.f32 %v698, %v800
    %v802 = vpop.f32.mrb[0].mxu0
    %803 = vmatprep.mubr.bf16.mxu0 0
    %804 = vmatmul.mubr.bf16.gmra.mrb[0].mxu0 %v676
    %v805 = vpop.f32.mrb[0].mxu0
    %v806 = vadd.f32 %v698, %v805
    %v807 = vpop.f32.mrb[0].mxu0
    %v808 = vpop.f32.mrb[0].mxu0
    %v809 = vadd.f32 %v698, %v808
    %v810 = vpop.f32.mrb[0].mxu0
    %811 = vdwg.mxu0
    %v812 = vmax.f32 %v782, 0.0
    %v813 = vmax.f32 %v785, 0.0
    %v814 = vmax.f32 %v790, 0.0
    %v815 = vmax.f32 %v793, 0.0
    %v816 = vmax.f32 %v798, 0.0
    %v817 = vmax.f32 %v801, 0.0
    %v818 = vmax.f32 %v806, 0.0
    %v819 = vmax.f32 %v809, 0.0
    %v820 = vpack.c.bf16 %v813, %v812
    %v821 = vpack.c.bf16 %v815, %v814
    %v822 = vpack.c.bf16 %v817, %v816
    %v823 = vpack.c.bf16 %v819, %v818
    %s824 = scalar_lea.vmem [#allocation7], 128
    %v825 = vld [vmem:[%s824] sm:$0xf]
    %v826 = vld [vmem:[%s824 + $0x4] sm:$0xf]
    %v827 = vld [vmem:[%s824 + $0x8] sm:$0xf]
    %v828 = vld [vmem:[%s824 + $0xc] sm:$0xf]
    %v829 = vld [vmem:[%s824 + $0x10] sm:$0xf]
    %v830 = vld [vmem:[%s824 + $0x14] sm:$0xf]
    %v831 = vld [vmem:[%s824 + $0x18] sm:$0xf]
    %v832 = vld [vmem:[%s824 + $0x1c] sm:$0xf]
    %v833 = vld [vmem:[%s824 + $0x20] sm:$0xf]
    %v834 = vld [vmem:[%s824 + $0x24] sm:$0xf]
    %v835 = vld [vmem:[%s824 + $0x28] sm:$0xf]
    %v836 = vld [vmem:[%s824 + $0x2c] sm:$0xf]
    %v837 = vld [vmem:[%s824 + $0x30] sm:$0xf]
    %v838 = vld [vmem:[%s824 + $0x34] sm:$0xf]
    %v839 = vld [vmem:[%s824 + $0x38] sm:$0xf]
    %v840 = vld [vmem:[%s824 + $0x3c] sm:$0xf]
    %v857 = vunpack.c.l.b16 %v825
    %v858 = vunpack.c.l.b16 %v826
    %v859 = vunpack.c.l.b16 %v827
    %v860 = vunpack.c.l.b16 %v828
    %v861 = vunpack.c.l.b16 %v829
    %v862 = vunpack.c.l.b16 %v830
    %v863 = vunpack.c.l.b16 %v831
    %v864 = vunpack.c.l.b16 %v832
    %v865 = vunpack.c.l.b16 %v833
    %v866 = vunpack.c.l.b16 %v834
    %v867 = vunpack.c.l.b16 %v835
    %v868 = vunpack.c.l.b16 %v836
    %v869 = vunpack.c.l.b16 %v837
    %v870 = vunpack.c.l.b16 %v838
    %v871 = vunpack.c.l.b16 %v839
    %v872 = vunpack.c.l.b16 %v840
    %v873 = vpack.c.b16 %v858, %v857
    %v874 = vpack.c.b16 %v860, %v859
    %v875 = vpack.c.b16 %v862, %v861
    %v876 = vpack.c.b16 %v864, %v863
    %v877 = vpack.c.b16 %v866, %v865
    %v878 = vpack.c.b16 %v868, %v867
    %v879 = vpack.c.b16 %v870, %v869
    %v880 = vpack.c.b16 %v872, %v871
    %889 = vmatprep.subr.bf16.mxu0 0
    %890 = vmatpush1.bf16.msra.mxu0 %v873
    %891 = vmatprep.subr.bf16.mxu0 0
    %892 = vmatpush1.bf16.msra.mxu0 %v874
    %893 = vmatprep.subr.bf16.mxu0 0
    %894 = vmatpush1.bf16.msra.mxu0 %v875
    %895 = vmatprep.subr.bf16.mxu0 0
    %896 = vmatpush1.bf16.msra.mxu0 %v876
    %897 = vmatprep.subr.bf16.mxu0 0
    %898 = vmatpush1.bf16.msra.mxu0 %v877
    %899 = vmatprep.subr.bf16.mxu0 0
    %900 = vmatpush1.bf16.msra.mxu0 %v878
    %901 = vmatprep.subr.bf16.mxu0 0
    %902 = vmatpush1.bf16.msra.mxu0 %v879
    %903 = vmatprep.subr.bf16.mxu0 0
    %904 = vmatpush1.bf16.msra.mxu0 %v880
    %905 = vmatprep.subr.bf16.mxu0 0
    %906 = vmatpush1.bf16.msra.mxu0 0
    %907 = vmatprep.subr.bf16.mxu0 0
    %908 = vmatpush1.bf16.msra.mxu0 0
    %909 = vmatprep.subr.bf16.mxu0 0
    %910 = vmatpush1.bf16.msra.mxu0 0
    %911 = vmatprep.subr.bf16.mxu0 0
    %912 = vmatpush1.bf16.msra.mxu0 0
    %913 = vmatprep.subr.bf16.mxu0 0
    %914 = vmatpush1.bf16.msra.mxu0 0
    %915 = vmatprep.subr.bf16.mxu0 0
    %916 = vmatpush1.bf16.msra.mxu0 0
    %917 = vmatprep.subr.bf16.mxu0 0
    %918 = vmatpush1.bf16.msra.mxu0 0
    %919 = vmatprep.subr.bf16.mxu0 0
    %920 = vmatpush1.bf16.msra.mxu0 0
    %921 = vmatprep.mubr.bf16.mxu0 0
    %922 = vmatmul.mubr.bf16.gmra.mrb[0].mxu0 %v820
    %v923 = vpop.f32.mrb[0].mxu0
    %v924 = vadd.f32 0.0, %v923
    %v925 = vpop.f32.mrb[0].mxu0
    %v926 = vpop.f32.mrb[0].mxu0
    %v927 = vadd.f32 0.0, %v926
    %v928 = vpop.f32.mrb[0].mxu0
    %929 = vmatprep.mubr.bf16.mxu0 0
    %930 = vmatmul.mubr.bf16.gmra.mrb[0].mxu0 %v821
    %v931 = vpop.f32.mrb[0].mxu0
    %v932 = vadd.f32 0.0, %v931
    %v933 = vpop.f32.mrb[0].mxu0
    %v934 = vpop.f32.mrb[0].mxu0
    %v935 = vadd.f32 0.0, %v934
    %v936 = vpop.f32.mrb[0].mxu0
    %937 = vmatprep.mubr.bf16.mxu0 0
    %938 = vmatmul.mubr.bf16.gmra.mrb[0].mxu0 %v822
    %v939 = vpop.f32.mrb[0].mxu0
    %v940 = vadd.f32 0.0, %v939
    %v941 = vpop.f32.mrb[0].mxu0
    %v942 = vpop.f32.mrb[0].mxu0
    %v943 = vadd.f32 0.0, %v942
    %v944 = vpop.f32.mrb[0].mxu0
    %945 = vmatprep.mubr.bf16.mxu0 0
    %946 = vmatmul.mubr.bf16.gmra.mrb[0].mxu0 %v823
    %v947 = vpop.f32.mrb[0].mxu0
    %v948 = vadd.f32 0.0, %v947
    %v949 = vpop.f32.mrb[0].mxu0
    %v950 = vpop.f32.mrb[0].mxu0
    %v951 = vadd.f32 0.0, %v950
    %v952 = vpop.f32.mrb[0].mxu0
    %953 = vdwg.mxu0
    %v954 = vadd.f32 %v665, %v924
    %v955 = vadd.f32 %v666, %v927
    %v956 = vadd.f32 %v667, %v932
    %v957 = vadd.f32 %v668, %v935
    %v958 = vadd.f32 %v669, %v940
    %v959 = vadd.f32 %v670, %v943
    %v960 = vadd.f32 %v671, %v948
    %v961 = vadd.f32 %v672, %v951
    %v962 = vld [vmem:[%s4 + $0x2] sm:$0x1]
    %v963 = vlaneseq
    %v964 = vshrl.u32 %v963, 7
    %v965 = vsub.s32 0, %v964
    %v966 = vrot.slane %v962, %v965
    %v967 = vadd.f32 %v954, %v966
    %v968 = vadd.f32 %v955, %v966
    %v969 = vadd.f32 %v956, %v966
    %v970 = vadd.f32 %v957, %v966
    %v971 = vadd.f32 %v958, %v966
    %v972 = vadd.f32 %v959, %v966
    %v973 = vadd.f32 %v960, %v966
    %v974 = vadd.f32 %v961, %v966
    %975 = vst [vmem:[#allocation8] sm:$0xff] %v967
    %976 = vst [vmem:[#allocation8 + $0x8] sm:$0xff] %v968
    %977 = vst [vmem:[#allocation8 + $0x10] sm:$0xff] %v969
    %978 = vst [vmem:[#allocation8 + $0x18] sm:$0xff] %v970
    %979 = vst [vmem:[#allocation8 + $0x20] sm:$0xff] %v971
    %980 = vst [vmem:[#allocation8 + $0x28] sm:$0xff] %v972
    %981 = vst [vmem:[#allocation8 + $0x30] sm:$0xff] %v973
    %982 = vst [vmem:[#allocation8 + $0x38] sm:$0xff] %v974
    // Predicated region
    $region34: #{tpu_custom_call.1} parent=1 // pred_check
      _
    $region35: #{tpu_custom_call.1} parent=1 // pred_check_branch
      %984 = sbr.rel (0) target = $region37
    $region36: #{tpu_custom_call.1} parent=1 // pred_region
      %s986 = ssub.s32 1024, 1024
      %987 = vsyncadd [#allocation4], %s986
      %s988 = sshll.u32 [#allocation8], 4
      %s989 = int_to_ptr.vmem [resolvable:$true] %s988
      %994 = dma.vmem_to_hbm [thread:$0]  %s989, 1024, %s5, [#allocation4], 128, 128, 8
    $region37: #{tpu_custom_call.1} parent=1 // pred_fallthru
      _
    // Predicated region
    $region38: #{tpu_custom_call.1} parent=1 // pred_check
      _
    $region39: #{tpu_custom_call.1} parent=1 // pred_check_branch
      %996 = sbr.rel (0) target = $region41
    $region40: #{tpu_custom_call.1} parent=1 // pred_region
      %997 = dma.done [#allocation4], 1024
    $region41: #{tpu_custom_call.1} parent=1 // pred_fallthru
      _
    %998 = vsyncpa [#allocation3], 1
    %999 = vsyncpa [#allocation6], 1
    %1000 = vsyncpa [#allocation4], 1

</llo_original>
